<compile_context>
chip_gen: v7x
topology: tpu7x:2x2x1
jax: 0.10.0
libtpu: 0.0.40
codegen_flags: <defaults>
</compile_context>

<pallas_src>
import functools

import jax
import jax.numpy as jnp
from jax import lax
from jax.experimental import pallas as pl
from jax.experimental.pallas import tpu as pltpu

_LANE = 128


# ----------------------------------------------------------------------------
# In-kernel helpers
# ----------------------------------------------------------------------------
def _accum_chunk(x_ref, max_acc, sum_acc, off, width, valid_limit):
    """Elementwise (VPU) accumulate one lane-chunk of x into the lane-partial
    running max / running sum accumulators.  `width` is a static int."""
    xj = x_ref[:, :, pl.ds(off, width)].astype(jnp.float32)   # (n_t, C, width)
    if valid_limit is not None:
        # Overhang masking (last HW block only): lane-only iota vs a scalar.
        pos = lax.broadcasted_iota(jnp.int32, (1, 1, width), 2)
        keep = pos < valid_limit
        xm = jnp.where(keep, xj, -jnp.inf)
        xs = jnp.where(keep, xj, 0.0)
    else:
        xm = xj
        xs = xj
    if width == _LANE:
        max_acc[...] = jnp.maximum(max_acc[...], xm)
        sum_acc[...] = sum_acc[...] + xs
    else:
        idx = (slice(None), slice(None), pl.ds(0, width))
        max_acc[idx] = jnp.maximum(max_acc[idx], xm)
        sum_acc[idx] = sum_acc[idx] + xs


def _run_chunks(x_ref, max_acc, sum_acc, nchunks, base_off, masked, hw_total):
    """Accumulate `nchunks` full 128-lane chunks of x_ref (pure VPU max/add)."""
    def chunk(off):
        limit = (hw_total - (base_off + off)) if masked else None
        _accum_chunk(x_ref, max_acc, sum_acc, off, _LANE, limit)

    if nchunks <= 8:                        # short: fully unrolled, static offsets
        for j in range(nchunks):
            chunk(j * _LANE)
    else:                                   # long: scf.for over chunks
        @pl.loop(0, nchunks)
        def _(j):
            chunk(pl.multiple_of(j * _LANE, _LANE))


def _se_head(max_part, sum_part, w1t_ref, w2t_ref, out_ref, inv_hw):
    """Finalize (once per batch tile): cross-lane reduce, fused SE matmuls,
    sigmoid, store."""
    n_t = out_ref.shape[0]
    mx = jnp.max(max_part, axis=-1)                 # (n_t, C)   XLU, once
    av = jnp.sum(sum_part, axis=-1) * inv_hw        # (n_t, C)
    # Fuse both SE branches into one matmul pair: rows = [max ; avg].
    # (The concat is a few vregs and runs once per batch tile.)
    pooled = jnp.concatenate([mx, av], axis=0)      # (2*n_t, C)
    h = jnp.maximum(jnp.dot(pooled, w1t_ref[...],
                            preferred_element_type=jnp.float32), 0.0)
    y = jnp.dot(h, w2t_ref[...], preferred_element_type=jnp.float32)
    att = jax.nn.sigmoid(y[:n_t] + y[n_t:])         # (n_t, C)
    out_ref[...] = att.reshape(out_ref.shape).astype(out_ref.dtype)


# ----------------------------------------------------------------------------
# Kernels
# ----------------------------------------------------------------------------
def _ca_single_pass_kernel(x_ref, w1t_ref, w2t_ref, out_ref,
                           max_acc, sum_acc, *, hw_total):
    """grid = (N_tiles,): the whole spatial extent is resident in the block."""
    max_acc[...] = jnp.full(max_acc.shape, -jnp.inf, max_acc.dtype)
    sum_acc[...] = jnp.zeros(sum_acc.shape, sum_acc.dtype)

    nfull = hw_total // _LANE
    rem = hw_total - nfull * _LANE
    _run_chunks(x_ref, max_acc, sum_acc, nfull, 0, False, hw_total)
    if rem:
        # True (static-width) remainder chunk: accumulate into lanes [0, rem).
        _accum_chunk(x_ref, max_acc, sum_acc, nfull * _LANE, rem, None)

    _se_head(max_acc[...], sum_acc[...], w1t_ref, w2t_ref, out_ref,
             1.0 / float(hw_total))


def _ca_reduce_kernel(x_ref, w1t_ref, w2t_ref, out_ref,
                      max_acc, sum_acc, *, hw_total, hw_block, mask_last):
    """grid = (N_tiles, HW_tiles); axis 1 (HW) is the reduction axis."""
    hw_id = pl.program_id(1)
    n_hw = pl.num_programs(1)

    @pl.when(hw_id == 0)
    def _init():
        max_acc[...] = jnp.full(max_acc.shape, -jnp.inf, max_acc.dtype)
        sum_acc[...] = jnp.zeros(sum_acc.shape, sum_acc.dtype)

    nchunks = hw_block // _LANE

    if mask_last:
        # Only the last HW block pays for the overhang mask.
        @pl.when(hw_id == n_hw - 1)
        def _masked():
            _run_chunks(x_ref, max_acc, sum_acc, nchunks,
                        hw_id * hw_block, True, hw_total)

        @pl.when(hw_id < n_hw - 1)
        def _plain():
            _run_chunks(x_ref, max_acc, sum_acc, nchunks, 0, False, hw_total)
    else:
        _run_chunks(x_ref, max_acc, sum_acc, nchunks, 0, False, hw_total)

    @pl.when(hw_id == n_hw - 1)
    def _finalize():
        _se_head(max_acc[...], sum_acc[...], w1t_ref, w2t_ref, out_ref,
                 1.0 / float(hw_total))


# ----------------------------------------------------------------------------
# Tiling / VMEM budgeting
# ----------------------------------------------------------------------------
def _vmem_budget():
    """Generation-aware scoped-VMEM limit and per-block x budget."""
    try:
        cap = int(pltpu.get_tpu_info().vmem_capacity_bytes)
    except Exception:                      # no TPU info: be conservative (v7x-sized)
        cap = 64 * 1024 * 1024
    # v5e/v6e (128 MiB physical) -> 64 MiB scoped; v7x (64 MiB) -> 48 MiB.
    vmem_limit = max(32 * 1024 * 1024, min((3 * cap) // 4, 64 * 1024 * 1024))
    # x is double-buffered; leave room for scratch, chunk temps, weights, out.
    block_budget = min(16 * 1024 * 1024, (vmem_limit - 4 * 1024 * 1024) // 3)
    return vmem_limit, block_budget


def _footprint_bytes(n_t, hw_t, C, Cr, x_itemsize, out_itemsize):
    x_blk = 2 * n_t * C * hw_t * x_itemsize            # double-buffered input
    scratch = 2 * n_t * C * _LANE * 4                  # lane-partial max/sum acc
    temps = 4 * n_t * C * _LANE * 4                    # chunk-sized temporaries
    weights = 2 * 2 * C * Cr * 4                       # both weights, dbl-buffered
    outs = 2 * n_t * max(C, _LANE) * out_itemsize
    return x_blk + scratch + temps + weights + outs


def _pick_tiles(N, C, Cr, HW, x_itemsize, out_itemsize, vmem_limit, block_budget):
    limit = vmem_limit - 2 * 1024 * 1024

    def fits(n_t, hw_t):
        return (n_t * C * hw_t * x_itemsize <= block_budget
                and _footprint_bytes(n_t, hw_t, C, Cr,
                                     x_itemsize, out_itemsize) <= limit)

    # Preferred: full HW per block -> single pass, no reduction grid axis.
    if fits(1, HW):
        # Keep >= 2 blocks on the parallel N axis when N allows (v7x dual-TC).
        n_t = 1
        for cand in range(max(1, N // 2), 0, -1):
            if N % cand == 0 and fits(cand, HW):
                n_t = cand
                break
        return n_t, HW

    # Fallback: split HW into lane-aligned blocks (multi-pass reduction).
    chunks_total = pl.cdiv(HW, _LANE)
    k = max(1, min(chunks_total, block_budget // max(1, C * x_itemsize * _LANE)))
    while k > 1 and not fits(1, k * _LANE):
        k -= 1
    # Prefer an exact divisor (in 128-lane units) so no overhang masking, as
    # long as it does not shrink the block by more than ~2x.
    if HW % _LANE == 0 and k < chunks_total:
        lo = max(1, k // 2)
        for d in range(k, lo - 1, -1):
            if (HW // _LANE) % d == 0:
                k = d
                break
    # TODO(synk): tile C for the pooling phase when even a (1, C, 128) block
    # exceeds the VMEM budget (very large channel counts), and split HW across
    # both v7x TensorCores when N == 1.
    return 1, min(k * _LANE, HW)


# ----------------------------------------------------------------------------
# Public wrapper
# ----------------------------------------------------------------------------
def channel_attention(x_nchw, w1, w2, *, n_tile=None, hw_tile=None):
    """CBAM ChannelAttention forward.

    x_nchw: (N, C, H, W)
    w1: (Cr, C) = Conv2d(C, Cr, 1, bias=False).weight[:, :, 0, 0]
    w2: (C, Cr) = Conv2d(Cr, C, 1, bias=False).weight[:, :, 0, 0]
    Returns sigmoid(SE(maxpool(x)) + SE(avgpool(x))) with shape (N, C, 1, 1).
    """
    N, C, H, W = x_nchw.shape
    Cr = w1.shape[0]
    assert w1.shape == (Cr, C) and w2.shape == (C, Cr)
    HW = H * W
    x3 = x_nchw.reshape(N, C, HW)          # keep native dtype: no HBM blow-up

    x_itemsize = jnp.dtype(x3.dtype).itemsize
    out_dtype = x_nchw.dtype
    out_itemsize = jnp.dtype(out_dtype).itemsize

    vmem_limit, block_budget = _vmem_budget()
    auto_n, auto_hw = _pick_tiles(N, C, Cr, HW, x_itemsize, out_itemsize,
                                  vmem_limit, block_budget)

    n_t = int(n_tile) if n_tile is not None else auto_n
    hw_t = min(int(hw_tile), HW) if hw_tile is not None else auto_hw
    assert N % n_t == 0, "n_tile must divide N"
    assert hw_t == HW or hw_t % _LANE == 0, \
        "hw_tile must equal H*W or be a multiple of 128"

    single_pass = (hw_t == HW)
    num_n = N // n_t
    num_hw = 1 if single_pass else pl.cdiv(HW, hw_t)
    mask_last = (not single_pass) and (HW % hw_t != 0)

    # Never let our own scoped limit be the thing that kills compilation.
    vmem_limit = int(max(vmem_limit,
                         _footprint_bytes(n_t, hw_t, C, Cr, x_itemsize,
                                          out_itemsize) + 2 * 1024 * 1024))

    # Tiny weights: pre-transposed on the host, f32, resident across the grid.
    w1_t = jnp.asarray(w1, jnp.float32).T   # (C, Cr)
    w2_t = jnp.asarray(w2, jnp.float32).T   # (Cr, C)

    cost = pl.CostEstimate(
        flops=2 * N * C * HW + 8 * N * C * Cr,
        transcendentals=N * C,
        bytes_accessed=(N * C * HW * x_itemsize + N * C * out_itemsize
                        + 2 * C * Cr * 4))

    scratch = [pltpu.VMEM((n_t, C, _LANE), jnp.float32),   # lane-partial max
               pltpu.VMEM((n_t, C, _LANE), jnp.float32)]   # lane-partial sum

    if single_pass:
        kernel = functools.partial(_ca_single_pass_kernel, hw_total=HW)
        grid_spec = pltpu.PrefetchScalarGridSpec(
            num_scalar_prefetch=0,
            grid=(num_n,),
            in_specs=[
                pl.BlockSpec((n_t, C, HW), lambda ni: (ni, 0, 0)),
                pl.BlockSpec((C, Cr), lambda ni: (0, 0)),
                pl.BlockSpec((Cr, C), lambda ni: (0, 0)),
            ],
            out_specs=pl.BlockSpec((n_t, 1, C), lambda ni: (ni, 0, 0)),
            scratch_shapes=scratch)
        dim_sem = ("parallel",)
    else:
        kernel = functools.partial(_ca_reduce_kernel, hw_total=HW,
                                   hw_block=hw_t, mask_last=mask_last)
        grid_spec = pltpu.PrefetchScalarGridSpec(
            num_scalar_prefetch=0,
            grid=(num_n, num_hw),
            in_specs=[
                pl.BlockSpec((n_t, C, hw_t), lambda ni, hi: (ni, 0, hi)),
                pl.BlockSpec((C, Cr), lambda ni, hi: (0, 0)),
                pl.BlockSpec((Cr, C), lambda ni, hi: (0, 0)),
            ],
            out_specs=pl.BlockSpec((n_t, 1, C), lambda ni, hi: (ni, 0, 0)),
            scratch_shapes=scratch)
        dim_sem = ("parallel", "arbitrary")

    out = pl.pallas_call(
        kernel,
        out_shape=jax.ShapeDtypeStruct((N, 1, C), out_dtype),
        grid_spec=grid_spec,
        compiler_params=pltpu.CompilerParams(
            dimension_semantics=dim_sem,
            vmem_limit_bytes=vmem_limit),
        cost_estimate=cost,
    )(x3, w1_t, w2_t)

    return out.reshape(N, C, 1, 1)


# ----------------------------------------------------------------------------
# Self-test
# ----------------------------------------------------------------------------
if __name__ == "__main__":
    reduction = 16
    N, C = 2, 64                 # channel must be divisible by reduction=16
    Cr = C // reduction

    key = jax.random.PRNGKey(0)
    kx1, kx2, k1, k2 = jax.random.split(key, 4)
    w1 = jax.random.normal(k1, (Cr, C), dtype=jnp.float32) * 0.1  # Conv2d(C, Cr, 1)
    w2 = jax.random.normal(k2, (C, Cr), dtype=jnp.float32) * 0.1  # Conv2d(Cr, C, 1)

    def reference(x):
        mx = jnp.max(x, axis=(2, 3))
        av = jnp.mean(x, axis=(2, 3))
        se = lambda p: jnp.maximum(p @ w1.T, 0.0) @ w2.T
        return jax.nn.sigmoid(se(mx) + se(av)).reshape(x.shape[0], x.shape[1], 1, 1)

    # (16,16): HW=256 (multiple of 128);  (13,13): HW=169 (remainder/mask path).
    for kx, (H, W) in [(kx1, (16, 16)), (kx2, (13, 13))]:
        x = jax.random.normal(kx, (N, C, H, W), dtype=jnp.float32)
        ref = reference(x)

        # Auto tiling: full-HW single-pass path (no reduction grid axis).
        out = channel_attention(x, w1, w2)
        jax.block_until_ready(out)
        assert out.shape == (N, C, 1, 1)
        assert jnp.allclose(out, ref, atol=1e-5, rtol=1e-5)

        # Forced multi-block HW reduction path: exercises the running
        # accumulators (and overhang masking for the 13x13 case).
        out2 = channel_attention(x, w1, w2, hw_tile=128)
        jax.block_until_ready(out2)
        assert jnp.allclose(out2, ref, atol=1e-5, rtol=1e-5)

    print("KERNEL_OK")
</pallas_src>

<mosaic_0001>
module attributes {stable_mosaic.version = 11 : i64} {
  func.func @_ca_single_pass_kernel(%arg0: i32, %arg1: memref<1x64x256xf32, #tpu.memory_space<vmem>>, %arg2: memref<64x4xf32, #tpu.memory_space<vmem>>, %arg3: memref<4x64xf32, #tpu.memory_space<vmem>>, %arg4: memref<1x1x64xf32, #tpu.memory_space<vmem>>, %arg5: memref<1x64x128xf32, #tpu.memory_space<vmem>>, %arg6: memref<1x64x128xf32, #tpu.memory_space<vmem>>) attributes {dimension_semantics = [#tpu.dimension_semantics<parallel>], iteration_bounds = array<i64: 2>, scalar_prefetch = 0 : i64, scratch_operands = 2 : i64, tpu.core_type = #tpu.core_type<tc>, window_params = [{transform_indices = @transform_0, window_bounds = array<i64: 1, 64, 256>}, {pipeline_mode = #tpu.pipeline_mode<synchronous>, transform_indices = @transform_1, window_bounds = array<i64: 64, 4>}, {pipeline_mode = #tpu.pipeline_mode<synchronous>, transform_indices = @transform_2, window_bounds = array<i64: 4, 64>}, {transform_indices = @transform_3, window_bounds = array<i64: 1, 1, 64>}]} {
    %cst = arith.constant 0xFF800000 : f32
    %0 = vector.broadcast %cst : f32 to vector<1x64x128xf32>
    %c0 = arith.constant 0 : index
    %c0_0 = arith.constant 0 : index
    %c0_1 = arith.constant 0 : index
    %1 = vector.load %arg5[%c0, %c0_0, %c0_1] : memref<1x64x128xf32, #tpu.memory_space<vmem>>, vector<1x64x128xf32>
    tpu.vector_store %arg5[%c0, %c0_0, %c0_1], %0 {strides = array<i32>} : memref<1x64x128xf32, #tpu.memory_space<vmem>>, vector<1x64x128xf32>,
    %cst_2 = arith.constant 0.000000e+00 : f32
    %2 = vector.broadcast %cst_2 : f32 to vector<1x64x128xf32>
    %c0_3 = arith.constant 0 : index
    %c0_4 = arith.constant 0 : index
    %c0_5 = arith.constant 0 : index
    %3 = vector.load %arg6[%c0_3, %c0_4, %c0_5] : memref<1x64x128xf32, #tpu.memory_space<vmem>>, vector<1x64x128xf32>
    tpu.vector_store %arg6[%c0_3, %c0_4, %c0_5], %2 {strides = array<i32>} : memref<1x64x128xf32, #tpu.memory_space<vmem>>, vector<1x64x128xf32>,
    %c0_6 = arith.constant 0 : index
    %c0_7 = arith.constant 0 : index
    %c0_8 = arith.constant 0 : index
    %4 = vector.load %arg1[%c0_6, %c0_7, %c0_8] : memref<1x64x256xf32, #tpu.memory_space<vmem>>, vector<1x64x128xf32>
    %c0_9 = arith.constant 0 : index
    %c0_10 = arith.constant 0 : index
    %c0_11 = arith.constant 0 : index
    %5 = vector.load %arg5[%c0_9, %c0_10, %c0_11] : memref<1x64x128xf32, #tpu.memory_space<vmem>>, vector<1x64x128xf32>
    %6 = arith.maximumf %5, %4 : vector<1x64x128xf32>
    %c0_12 = arith.constant 0 : index
    %c0_13 = arith.constant 0 : index
    %c0_14 = arith.constant 0 : index
    %7 = vector.load %arg5[%c0_12, %c0_13, %c0_14] : memref<1x64x128xf32, #tpu.memory_space<vmem>>, vector<1x64x128xf32>
    tpu.vector_store %arg5[%c0_12, %c0_13, %c0_14], %6 {strides = array<i32>} : memref<1x64x128xf32, #tpu.memory_space<vmem>>, vector<1x64x128xf32>,
    %c0_15 = arith.constant 0 : index
    %c0_16 = arith.constant 0 : index
    %c0_17 = arith.constant 0 : index
    %8 = vector.load %arg6[%c0_15, %c0_16, %c0_17] : memref<1x64x128xf32, #tpu.memory_space<vmem>>, vector<1x64x128xf32>
    %9 = arith.addf %8, %4 : vector<1x64x128xf32>
    %c0_18 = arith.constant 0 : index
    %c0_19 = arith.constant 0 : index
    %c0_20 = arith.constant 0 : index
    %10 = vector.load %arg6[%c0_18, %c0_19, %c0_20] : memref<1x64x128xf32, #tpu.memory_space<vmem>>, vector<1x64x128xf32>
    tpu.vector_store %arg6[%c0_18, %c0_19, %c0_20], %9 {strides = array<i32>} : memref<1x64x128xf32, #tpu.memory_space<vmem>>, vector<1x64x128xf32>,
    %c0_21 = arith.constant 0 : index
    %c0_22 = arith.constant 0 : index
    %c128 = arith.constant 128 : index
    %11 = vector.load %arg1[%c0_21, %c0_22, %c128] : memref<1x64x256xf32, #tpu.memory_space<vmem>>, vector<1x64x128xf32>
    %c0_23 = arith.constant 0 : index
    %c0_24 = arith.constant 0 : index
    %c0_25 = arith.constant 0 : index
    %12 = vector.load %arg5[%c0_23, %c0_24, %c0_25] : memref<1x64x128xf32, #tpu.memory_space<vmem>>, vector<1x64x128xf32>
    %13 = arith.maximumf %12, %11 : vector<1x64x128xf32>
    %c0_26 = arith.constant 0 : index
    %c0_27 = arith.constant 0 : index
    %c0_28 = arith.constant 0 : index
    %14 = vector.load %arg5[%c0_26, %c0_27, %c0_28] : memref<1x64x128xf32, #tpu.memory_space<vmem>>, vector<1x64x128xf32>
    tpu.vector_store %arg5[%c0_26, %c0_27, %c0_28], %13 {strides = array<i32>} : memref<1x64x128xf32, #tpu.memory_space<vmem>>, vector<1x64x128xf32>,
    %c0_29 = arith.constant 0 : index
    %c0_30 = arith.constant 0 : index
    %c0_31 = arith.constant 0 : index
    %15 = vector.load %arg6[%c0_29, %c0_30, %c0_31] : memref<1x64x128xf32, #tpu.memory_space<vmem>>, vector<1x64x128xf32>
    %16 = arith.addf %15, %11 : vector<1x64x128xf32>
    %c0_32 = arith.constant 0 : index
    %c0_33 = arith.constant 0 : index
    %c0_34 = arith.constant 0 : index
    %17 = vector.load %arg6[%c0_32, %c0_33, %c0_34] : memref<1x64x128xf32, #tpu.memory_space<vmem>>, vector<1x64x128xf32>
    tpu.vector_store %arg6[%c0_32, %c0_33, %c0_34], %16 {strides = array<i32>} : memref<1x64x128xf32, #tpu.memory_space<vmem>>, vector<1x64x128xf32>,
    %c0_35 = arith.constant 0 : index
    %c0_36 = arith.constant 0 : index
    %c0_37 = arith.constant 0 : index
    %18 = vector.load %arg5[%c0_35, %c0_36, %c0_37] : memref<1x64x128xf32, #tpu.memory_space<vmem>>, vector<1x64x128xf32>
    %c0_38 = arith.constant 0 : index
    %c0_39 = arith.constant 0 : index
    %c0_40 = arith.constant 0 : index
    %19 = vector.load %arg6[%c0_38, %c0_39, %c0_40] : memref<1x64x128xf32, #tpu.memory_space<vmem>>, vector<1x64x128xf32>
    %cst_41 = arith.constant dense<0xFF800000> : vector<1x64xf32>
    %20 = vector.multi_reduction <maximumf>, %18, %cst_41 [2] : vector<1x64x128xf32> to vector<1x64xf32>
    %cst_42 = arith.constant dense<0.000000e+00> : vector<1x64xf32>
    %21 = vector.multi_reduction <add>, %19, %cst_42 [2] : vector<1x64x128xf32> to vector<1x64xf32>
    %cst_43 = arith.constant 3.906250e-03 : f32
    %22 = vector.broadcast %cst_43 : f32 to vector<1x64xf32>
    %23 = arith.mulf %21, %22 : vector<1x64xf32>
    %24 = tpu.concatenate %20, %23 in 0 : vector<1x64xf32>, vector<1x64xf32> -> vector<2x64xf32>
    %c0_44 = arith.constant 0 : index
    %c0_45 = arith.constant 0 : index
    %25 = vector.load %arg2[%c0_44, %c0_45] : memref<64x4xf32, #tpu.memory_space<vmem>>, vector<64x4xf32>
    %cst_46 = arith.constant dense<0.000000e+00> : vector<2x4xf32>
    %26 = tpu.matmul %24, %25, %cst_46 {dimension_numbers = #tpu.dot_dimension_numbers<[1], [0], [0], [1], [0, 0, 1, 1], [], []>} : vector<2x64xf32>, vector<64x4xf32>, vector<2x4xf32> -> vector<2x4xf32>
    %cst_47 = arith.constant 0.000000e+00 : f32
    %27 = vector.broadcast %cst_47 : f32 to vector<2x4xf32>
    %28 = arith.maximumf %26, %27 : vector<2x4xf32>
    %c0_48 = arith.constant 0 : index
    %c0_49 = arith.constant 0 : index
    %29 = vector.load %arg3[%c0_48, %c0_49] : memref<4x64xf32, #tpu.memory_space<vmem>>, vector<4x64xf32>
    %cst_50 = arith.constant dense<0.000000e+00> : vector<2x64xf32>
    %30 = tpu.matmul %28, %29, %cst_50 {dimension_numbers = #tpu.dot_dimension_numbers<[1], [0], [0], [1], [0, 0, 1, 1], [], []>} : vector<2x4xf32>, vector<4x64xf32>, vector<2x64xf32> -> vector<2x64xf32>
    %31 = vector.extract_strided_slice %30 {offsets = [0, 0], sizes = [1, 64], strides = [1, 1]} : vector<2x64xf32> to vector<1x64xf32>
    %32 = vector.extract_strided_slice %30 {offsets = [1, 0], sizes = [1, 64], strides = [1, 1]} : vector<2x64xf32> to vector<1x64xf32>
    %33 = arith.addf %31, %32 : vector<1x64xf32>
    %34 = arith.negf %33 : vector<1x64xf32>
    %35 = math.exp %34 : vector<1x64xf32>
    %cst_51 = arith.constant 1.000000e+00 : f32
    %36 = vector.broadcast %cst_51 : f32 to vector<1x64xf32>
    %37 = arith.addf %36, %35 : vector<1x64xf32>
    %38 = arith.divf %36, %37 : vector<1x64xf32>
    %39 = vector.shape_cast %38 : vector<1x64xf32> to vector<1x1x64xf32>
    %c0_52 = arith.constant 0 : index
    %c0_53 = arith.constant 0 : index
    %c0_54 = arith.constant 0 : index
    %40 = vector.load %arg4[%c0_52, %c0_53, %c0_54] : memref<1x1x64xf32, #tpu.memory_space<vmem>>, vector<1x1x64xf32>
    tpu.vector_store %arg4[%c0_52, %c0_53, %c0_54], %39 {strides = array<i32>} : memref<1x1x64xf32, #tpu.memory_space<vmem>>, vector<1x1x64xf32>,
    return
  }
  func.func @transform_0(%arg0: i32) -> (i32, i32, i32) {
    %c0_i32 = arith.constant 0 : i32
    %c0_i32_0 = arith.constant 0 : i32
    %c0_i32_1 = arith.constant 0 : i32
    return %arg0, %c0_i32, %c0_i32_0 : i32, i32, i32
  }
  func.func @transform_1(%arg0: i32) -> (i32, i32) {
    %c0_i32 = arith.constant 0 : i32
    %c0_i32_0 = arith.constant 0 : i32
    %c0_i32_1 = arith.constant 0 : i32
    return %c0_i32, %c0_i32_0 : i32, i32
  }
  func.func @transform_2(%arg0: i32) -> (i32, i32) {
    %c0_i32 = arith.constant 0 : i32
    %c0_i32_0 = arith.constant 0 : i32
    %c0_i32_1 = arith.constant 0 : i32
    return %c0_i32, %c0_i32_0 : i32, i32
  }
  func.func @transform_3(%arg0: i32) -> (i32, i32, i32) {
    %c0_i32 = arith.constant 0 : i32
    %c0_i32_0 = arith.constant 0 : i32
    %c0_i32_1 = arith.constant 0 : i32
    return %arg0, %c0_i32, %c0_i32_0 : i32, i32, i32
  }
}

</mosaic_0001>

<llo_original>
// kernel: tpu_custom_call.1
$region0: #{tpu_custom_call.1}
  #allocation0 [shape = 'u32[]', space=smem, size = 0x4, offset = 0x4, fixed_abs, tag = 'smem constant byte address 0x4 - core index']
  #allocation1 [shape = 'u32[144,128]{1,0:T(1,128)}', space=vmem, size = 0x12000, scoped, tag = 'internal scratch']
  #allocation2 [shape = 'f32[1,64,128]{2,1,0:T(8,128)}', space=vmem, size = 0x8000, scoped, tag = 'scratch operand']
  #allocation3 [shape = 'f32[1,64,128]{2,1,0:T(8,128)}', space=vmem, size = 0x8000, scoped, tag = 'scratch operand']
  %s0 = inlined_call_operand.hbm [shape: f32[2,64,256], index: 0, kind: input, shape index: {}]
  %s1 = inlined_call_operand.vmem [shape: f32[64,4], index: 1, kind: input, shape index: {}]
  %s2 = inlined_call_operand.vmem [shape: f32[4,64], index: 2, kind: input, shape index: {}]
  %s3 = inlined_call_operand.hbm [shape: f32[2,1,64], index: 3, kind: output, shape index: {}]
  %s4 = sld [smem:[#allocation0]]
  $region49: #{tpu_custom_call.1} parent=0
    _
  %s6 = ssub.s32 1, %s4
  %s7 = scalar_select 0, %s6, %s4
  $region1: #{tpu_custom_call.1} parent=0
    #allocation4 [shape = 'u8[131072]{0}', space=vmem, size = 0x20000, scoped, tag = 'input window, operand 0']
    #allocation5 [shape = 's32[2]{0}', space=sflag, size = 0x8, scoped, tag = 'scoped memory for tpu_custom_call.1']
    #allocation6 [shape = 's32[2]{0}', space=sflag, size = 0x8, scoped, tag = 'scoped memory for tpu_custom_call.1']
    #allocation7 [shape = 'u8[1024]{0}', space=vmem, size = 0x400, scoped, tag = 'output window, operand 0']
    %8 = vsyncpa [#allocation5], 0
    %s9 = scalar_lea.sflag [#allocation5], 1
    %10 = vsyncpa %s9, 0
    %11 = vsyncpa [#allocation6], 0
    %s12 = scalar_lea.sflag [#allocation6], 1
    %13 = vsyncpa %s12, 0
    loop: start=0, step=1, limit=4
    $region2: #{tpu_custom_call.1} parent=1 // loop_pre_header
      _
    $region3: #{tpu_custom_call.1} parent=1 // loop_header
      %s15 = sphi 0, %s19
      %p16 = scmp.ge.s32.totalorder %s15, 4
      %s25 = sphi 0, %s27
      %s28 = sphi 0, %s25
      %s29 = sphi 0, %s28
      %s45 = sphi 0, %s29
      %s49 = sphi 0, %s49
      %s51 = sphi 0, %s49
      %s52 = sphi 0, %s51
      %s66 = sphi 0, %s52
      %s70 = sphi 0, %s70
      %s72 = sphi 0, %s70
      %s73 = sphi 0, %s72
      %s87 = sphi 0, %s73
      %s93 = sphi 0, %s95
      %s96 = sphi 0, %s93
      %s97 = sphi 0, %s96
      %s113 = sphi 0, %s97
    $region4: #{tpu_custom_call.1} parent=1 // loop_header_branch
      %18 = sbr.rel (%p16) target = $region8
    $region5: #{tpu_custom_call.1} parent=1 // loop_body
      %s20 = ssub.s32 %s15, 1
      %s21 = ssub.s32 %s15, 2
      %s22 = sadd.s32 %s15, 1
      %s23 = ssub.s32 %s15, %s22
      %p24 = scmp.eq.s32.totalorder %s23, 0
      %s26 = sadd.s32 %s25, 1
      %s27 = scalar_select %p24, %s25, %s26
      %p30 = pneg %p24
      %p31 = scmp.eq.s32.totalorder %s15, 1
      %p32 = por %p30, %p31
      %p33 = scmp.ne.s32.totalorder %s25, %s28
      %p34 = scmp.eq.s32.totalorder %s15, 0
      %p35 = por %p33, %p34
      %p36 = scmp.ne.s32.totalorder %s25, %s28
      %p37 = scmp.eq.s32.totalorder %s20, 1
      %p38 = por %p36, %p37
      %p39 = scmp.ne.s32.totalorder %s28, %s29
      %p40 = scmp.eq.s32.totalorder %s20, 0
      %p41 = por %p39, %p40
      %p42 = scmp.ne.s32.totalorder %s28, %s29
      %p43 = scmp.eq.s32.totalorder %s21, 1
      %p44 = por %p42, %p43
      %p46 = scmp.ne.s32.totalorder %s29, %s45
      %p47 = scmp.eq.s32.totalorder %s21, 0
      %p48 = por %p46, %p47
      %s50 = sadd.s32 %s49, 1
      %p53 = scmp.eq.s32.totalorder %s15, 1
      %p54 = scmp.ne.s32.totalorder %s49, %s51
      %p55 = scmp.eq.s32.totalorder %s15, 0
      %p56 = por %p54, %p55
      %p57 = scmp.ne.s32.totalorder %s49, %s51
      %p58 = scmp.eq.s32.totalorder %s20, 1
      %p59 = por %p57, %p58
      %p60 = scmp.ne.s32.totalorder %s51, %s52
      %p61 = scmp.eq.s32.totalorder %s20, 0
      %p62 = por %p60, %p61
      %p63 = scmp.ne.s32.totalorder %s51, %s52
      %p64 = scmp.eq.s32.totalorder %s21, 1
      %p65 = por %p63, %p64
      %p67 = scmp.ne.s32.totalorder %s52, %s66
      %p68 = scmp.eq.s32.totalorder %s21, 0
      %p69 = por %p67, %p68
      %s71 = sadd.s32 %s70, 1
      %p74 = scmp.eq.s32.totalorder %s15, 1
      %p75 = scmp.ne.s32.totalorder %s70, %s72
      %p76 = scmp.eq.s32.totalorder %s15, 0
      %p77 = por %p75, %p76
      %p78 = scmp.ne.s32.totalorder %s70, %s72
      %p79 = scmp.eq.s32.totalorder %s20, 1
      %p80 = por %p78, %p79
      %p81 = scmp.ne.s32.totalorder %s72, %s73
      %p82 = scmp.eq.s32.totalorder %s20, 0
      %p83 = por %p81, %p82
      %p84 = scmp.ne.s32.totalorder %s72, %s73
      %p85 = scmp.eq.s32.totalorder %s21, 1
      %p86 = por %p84, %p85
      %p88 = scmp.ne.s32.totalorder %s73, %s87
      %p89 = scmp.eq.s32.totalorder %s21, 0
      %p90 = por %p88, %p89
      %s91 = ssub.s32 %s15, %s22
      %p92 = scmp.eq.s32.totalorder %s91, 0
      %s94 = sadd.s32 %s93, 1
      %s95 = scalar_select %p92, %s93, %s94
      %p98 = pneg %p92
      %p99 = scmp.eq.s32.totalorder %s15, 1
      %p100 = por %p98, %p99
      %p101 = scmp.ne.s32.totalorder %s93, %s96
      %p102 = scmp.eq.s32.totalorder %s15, 0
      %p103 = por %p101, %p102
      %p104 = scmp.ne.s32.totalorder %s93, %s96
      %p105 = scmp.eq.s32.totalorder %s20, 1
      %p106 = por %p104, %p105
      %p107 = scmp.ne.s32.totalorder %s96, %s97
      %p108 = scmp.eq.s32.totalorder %s20, 0
      %p109 = por %p107, %p108
      %p110 = scmp.ne.s32.totalorder %s96, %s97
      %p111 = scmp.eq.s32.totalorder %s21, 1
      %p112 = por %p110, %p111
      %p114 = scmp.ne.s32.totalorder %s97, %s113
      %p115 = scmp.eq.s32.totalorder %s21, 0
      %p116 = por %p114, %p115
      %p117 = scmp.le.s32.totalorder 1, %s15
      %p118 = scmp.lt.s32.totalorder %s15, 3
      %p119 = pnand %p117, %p118
      %p120 = pneg %p119
      // Predicated region
      $region9: #{tpu_custom_call.1} parent=5 // pred_check
        _
      $region10: #{tpu_custom_call.1} parent=5 // pred_check_branch
        %122 = sbr.rel (%p119) target = $region12
      $region11: #{tpu_custom_call.1} parent=5 // pred_region
        %s123 = ssub.s32 %s15, 1
        // Predicated region
        $region13: #{tpu_custom_call.1} parent=11 // pred_check
          %p124 = pneg %p62
        $region14: #{tpu_custom_call.1} parent=11 // pred_check_branch
          %126 = sbr.rel (%p124) target = $region16
        $region15: #{tpu_custom_call.1} parent=11 // pred_region
          _
        $region16: #{tpu_custom_call.1} parent=11 // pred_fallthru
          _
        // Predicated region
        $region17: #{tpu_custom_call.1} parent=11 // pred_check
          %p127 = pneg %p83
        $region18: #{tpu_custom_call.1} parent=11 // pred_check_branch
          %129 = sbr.rel (%p127) target = $region20
        $region19: #{tpu_custom_call.1} parent=11 // pred_region
          _
        $region20: #{tpu_custom_call.1} parent=11 // pred_fallthru
          _
      $region12: #{tpu_custom_call.1} parent=5 // pred_fallthru
        _
      %p130 = scmp.lt.s32.totalorder %s15, 2
      // Predicated region
      $region21: #{tpu_custom_call.1} parent=5 // pred_check
        %p131 = pneg %p130
      $region22: #{tpu_custom_call.1} parent=5 // pred_check_branch
        %133 = sbr.rel (%p131) target = $region24
      $region23: #{tpu_custom_call.1} parent=5 // pred_region
        // Predicated region
        $region25: #{tpu_custom_call.1} parent=23 // pred_check
          %p134 = pneg %p35
        $region26: #{tpu_custom_call.1} parent=23 // pred_check_branch
          %136 = sbr.rel (%p134) target = $region28
        $region27: #{tpu_custom_call.1} parent=23 // pred_region
          %s137 = sand.u32 %s25, 1
          %s138 = scalar_lea.sflag [#allocation5], %s137
          %s139 = sand.u32 %s25, 1
          %s140 = smul.addr %s139, 128
          %s141 = scalar_lea.vmem [#allocation4], %s140
          %s143 = ssub.s32 2048, 2048
          %144 = vsyncadd %s138, %s143
          %s145 = smul.addr %s15, 16
          %s146 = smul.addr %s145, 128
          %s147 = scalar_lea.hbm %s0, %s146
          %s148 = sshll.u32 %s141, 4
          %s149 = int_to_ptr.vmem [resolvable:$true] %s148
          %154 = dma.hbm_to_vmem [thread:$0]  %s147, 2048, %s149, %s138, 256, 256, 16
        $region28: #{tpu_custom_call.1} parent=23 // pred_fallthru
          _
      $region24: #{tpu_custom_call.1} parent=5 // pred_fallthru
        _
      %p155 = scmp.le.s32.totalorder 1, %s15
      %p156 = scmp.lt.s32.totalorder %s15, 3
      %p157 = pnand %p155, %p156
      %p158 = pneg %p157
      // Predicated region
      $region29: #{tpu_custom_call.1} parent=5 // pred_check
        _
      $region30: #{tpu_custom_call.1} parent=5 // pred_check_branch
        %160 = sbr.rel (%p157) target = $region32
      $region31: #{tpu_custom_call.1} parent=5 // pred_region
        %s161 = ssub.s32 %s15, 1
        %s162 = sand.u32 %s28, 1
        %s163 = scalar_lea.sflag [#allocation5], %s162
        %s164 = sand.u32 %s28, 1
        %s165 = smul.addr %s164, 128
        %s166 = scalar_lea.vmem [#allocation4], %s165
        // Predicated region
        $region33: #{tpu_custom_call.1} parent=31 // pred_check
          %p167 = pneg %p41
        $region34: #{tpu_custom_call.1} parent=31 // pred_check_branch
          %169 = sbr.rel (%p167) target = $region36
        $region35: #{tpu_custom_call.1} parent=31 // pred_region
          %170 = dma.done %s163, 2048
        $region36: #{tpu_custom_call.1} parent=31 // pred_fallthru
          _
        %s171 = sand.u32 %s28, 1
        %s172 = scalar_lea.sflag [#allocation5], %s171
        %s173 = sand.u32 %s28, 1
        %s174 = smul.addr %s173, 128
        %s175 = scalar_lea.vmem [#allocation4], %s174
        %p176 = pneg %p41
        %p177 = pneg %p38
        %p178 = pneg %p62
        %p179 = pneg %p59
        %p180 = pneg %p83
        %p181 = pneg %p80
        %p182 = pneg %p109
        %p183 = pneg %p106
        %s184 = sand.u32 %s96, 1
        %s185 = scalar_lea.sflag [#allocation6], %s184
        %s186 = sand.u32 %s96, 1
        %s187 = scalar_lea.vmem [#allocation7], %s186
        %188 = vst [vmem:[#allocation2] sm:$0xff] -inf
        %189 = vst [vmem:[#allocation2 + $0x8] sm:$0xff] -inf
        %190 = vst [vmem:[#allocation2 + $0x10] sm:$0xff] -inf
        %191 = vst [vmem:[#allocation2 + $0x18] sm:$0xff] -inf
        %192 = vst [vmem:[#allocation2 + $0x20] sm:$0xff] -inf
        %193 = vst [vmem:[#allocation2 + $0x28] sm:$0xff] -inf
        %194 = vst [vmem:[#allocation2 + $0x30] sm:$0xff] -inf
        %195 = vst [vmem:[#allocation2 + $0x38] sm:$0xff] -inf
        %196 = vst [vmem:[#allocation3] sm:$0xff] 0.0
        %197 = vst [vmem:[#allocation3 + $0x8] sm:$0xff] 0.0
        %198 = vst [vmem:[#allocation3 + $0x10] sm:$0xff] 0.0
        %199 = vst [vmem:[#allocation3 + $0x18] sm:$0xff] 0.0
        %200 = vst [vmem:[#allocation3 + $0x20] sm:$0xff] 0.0
        %201 = vst [vmem:[#allocation3 + $0x28] sm:$0xff] 0.0
        %202 = vst [vmem:[#allocation3 + $0x30] sm:$0xff] 0.0
        %203 = vst [vmem:[#allocation3 + $0x38] sm:$0xff] 0.0
        %v204 = vld [vmem:[%s166] sm:$0xff]
        %v205 = vld [vmem:[%s166 + $0x10] sm:$0xff]
        %v206 = vld [vmem:[%s166 + $0x20] sm:$0xff]
        %v207 = vld [vmem:[%s166 + $0x30] sm:$0xff]
        %v208 = vld [vmem:[%s166 + $0x40] sm:$0xff]
        %v209 = vld [vmem:[%s166 + $0x50] sm:$0xff]
        %v210 = vld [vmem:[%s166 + $0x60] sm:$0xff]
        %v211 = vld [vmem:[%s166 + $0x70] sm:$0xff]
        %v212 = vld [vmem:[#allocation2] sm:$0xff]
        %v213 = vld [vmem:[#allocation2 + $0x8] sm:$0xff]
        %v214 = vld [vmem:[#allocation2 + $0x10] sm:$0xff]
        %v215 = vld [vmem:[#allocation2 + $0x18] sm:$0xff]
        %v216 = vld [vmem:[#allocation2 + $0x20] sm:$0xff]
        %v217 = vld [vmem:[#allocation2 + $0x28] sm:$0xff]
        %v218 = vld [vmem:[#allocation2 + $0x30] sm:$0xff]
        %v219 = vld [vmem:[#allocation2 + $0x38] sm:$0xff]
        %v220 = vmax.f32 %v212, %v204
        %v221 = vmax.f32 %v213, %v205
        %v222 = vmax.f32 %v214, %v206
        %v223 = vmax.f32 %v215, %v207
        %v224 = vmax.f32 %v216, %v208
        %v225 = vmax.f32 %v217, %v209
        %v226 = vmax.f32 %v218, %v210
        %v227 = vmax.f32 %v219, %v211
        %228 = vst [vmem:[#allocation2] sm:$0xff] %v220
        %229 = vst [vmem:[#allocation2 + $0x8] sm:$0xff] %v221
        %230 = vst [vmem:[#allocation2 + $0x10] sm:$0xff] %v222
        %231 = vst [vmem:[#allocation2 + $0x18] sm:$0xff] %v223
        %232 = vst [vmem:[#allocation2 + $0x20] sm:$0xff] %v224
        %233 = vst [vmem:[#allocation2 + $0x28] sm:$0xff] %v225
        %234 = vst [vmem:[#allocation2 + $0x30] sm:$0xff] %v226
        %235 = vst [vmem:[#allocation2 + $0x38] sm:$0xff] %v227
        %v236 = vld [vmem:[#allocation3] sm:$0xff]
        %v237 = vld [vmem:[#allocation3 + $0x8] sm:$0xff]
        %v238 = vld [vmem:[#allocation3 + $0x10] sm:$0xff]
        %v239 = vld [vmem:[#allocation3 + $0x18] sm:$0xff]
        %v240 = vld [vmem:[#allocation3 + $0x20] sm:$0xff]
        %v241 = vld [vmem:[#allocation3 + $0x28] sm:$0xff]
        %v242 = vld [vmem:[#allocation3 + $0x30] sm:$0xff]
        %v243 = vld [vmem:[#allocation3 + $0x38] sm:$0xff]
        %v244 = vadd.f32 %v236, %v204
        %v245 = vadd.f32 %v237, %v205
        %v246 = vadd.f32 %v238, %v206
        %v247 = vadd.f32 %v239, %v207
        %v248 = vadd.f32 %v240, %v208
        %v249 = vadd.f32 %v241, %v209
        %v250 = vadd.f32 %v242, %v210
        %v251 = vadd.f32 %v243, %v211
        %252 = vst [vmem:[#allocation3] sm:$0xff] %v244
        %253 = vst [vmem:[#allocation3 + $0x8] sm:$0xff] %v245
        %254 = vst [vmem:[#allocation3 + $0x10] sm:$0xff] %v246
        %255 = vst [vmem:[#allocation3 + $0x18] sm:$0xff] %v247
        %256 = vst [vmem:[#allocation3 + $0x20] sm:$0xff] %v248
        %257 = vst [vmem:[#allocation3 + $0x28] sm:$0xff] %v249
        %258 = vst [vmem:[#allocation3 + $0x30] sm:$0xff] %v250
        %259 = vst [vmem:[#allocation3 + $0x38] sm:$0xff] %v251
        %v260 = vld [vmem:[%s166 + $0x8] sm:$0xff]
        %v261 = vld [vmem:[%s166 + $0x18] sm:$0xff]
        %v262 = vld [vmem:[%s166 + $0x28] sm:$0xff]
        %v263 = vld [vmem:[%s166 + $0x38] sm:$0xff]
        %v264 = vld [vmem:[%s166 + $0x48] sm:$0xff]
        %v265 = vld [vmem:[%s166 + $0x58] sm:$0xff]
        %v266 = vld [vmem:[%s166 + $0x68] sm:$0xff]
        %v267 = vld [vmem:[%s166 + $0x78] sm:$0xff]
        %v268 = vld [vmem:[#allocation2] sm:$0xff]
        %v269 = vld [vmem:[#allocation2 + $0x8] sm:$0xff]
        %v270 = vld [vmem:[#allocation2 + $0x10] sm:$0xff]
        %v271 = vld [vmem:[#allocation2 + $0x18] sm:$0xff]
        %v272 = vld [vmem:[#allocation2 + $0x20] sm:$0xff]
        %v273 = vld [vmem:[#allocation2 + $0x28] sm:$0xff]
        %v274 = vld [vmem:[#allocation2 + $0x30] sm:$0xff]
        %v275 = vld [vmem:[#allocation2 + $0x38] sm:$0xff]
        %v276 = vmax.f32 %v268, %v260
        %v277 = vmax.f32 %v269, %v261
        %v278 = vmax.f32 %v270, %v262
        %v279 = vmax.f32 %v271, %v263
        %v280 = vmax.f32 %v272, %v264
        %v281 = vmax.f32 %v273, %v265
        %v282 = vmax.f32 %v274, %v266
        %v283 = vmax.f32 %v275, %v267
        %284 = vst [vmem:[#allocation2] sm:$0xff] %v276
        %285 = vst [vmem:[#allocation2 + $0x8] sm:$0xff] %v277
        %286 = vst [vmem:[#allocation2 + $0x10] sm:$0xff] %v278
        %287 = vst [vmem:[#allocation2 + $0x18] sm:$0xff] %v279
        %288 = vst [vmem:[#allocation2 + $0x20] sm:$0xff] %v280
        %289 = vst [vmem:[#allocation2 + $0x28] sm:$0xff] %v281
        %290 = vst [vmem:[#allocation2 + $0x30] sm:$0xff] %v282
        %291 = vst [vmem:[#allocation2 + $0x38] sm:$0xff] %v283
        %v292 = vld [vmem:[#allocation3] sm:$0xff]
        %v293 = vld [vmem:[#allocation3 + $0x8] sm:$0xff]
        %v294 = vld [vmem:[#allocation3 + $0x10] sm:$0xff]
        %v295 = vld [vmem:[#allocation3 + $0x18] sm:$0xff]
        %v296 = vld [vmem:[#allocation3 + $0x20] sm:$0xff]
        %v297 = vld [vmem:[#allocation3 + $0x28] sm:$0xff]
        %v298 = vld [vmem:[#allocation3 + $0x30] sm:$0xff]
        %v299 = vld [vmem:[#allocation3 + $0x38] sm:$0xff]
        %v300 = vadd.f32 %v292, %v260
        %v301 = vadd.f32 %v293, %v261
        %v302 = vadd.f32 %v294, %v262
        %v303 = vadd.f32 %v295, %v263
        %v304 = vadd.f32 %v296, %v264
        %v305 = vadd.f32 %v297, %v265
        %v306 = vadd.f32 %v298, %v266
        %v307 = vadd.f32 %v299, %v267
        %308 = vst [vmem:[#allocation3] sm:$0xff] %v300
        %309 = vst [vmem:[#allocation3 + $0x8] sm:$0xff] %v301
        %310 = vst [vmem:[#allocation3 + $0x10] sm:$0xff] %v302
        %311 = vst [vmem:[#allocation3 + $0x18] sm:$0xff] %v303
        %312 = vst [vmem:[#allocation3 + $0x20] sm:$0xff] %v304
        %313 = vst [vmem:[#allocation3 + $0x28] sm:$0xff] %v305
        %314 = vst [vmem:[#allocation3 + $0x30] sm:$0xff] %v306
        %315 = vst [vmem:[#allocation3 + $0x38] sm:$0xff] %v307
        %v316 = vld [vmem:[#allocation2] sm:$0xff]
        %v317 = vld [vmem:[#allocation2 + $0x8] sm:$0xff]
        %v318 = vld [vmem:[#allocation2 + $0x10] sm:$0xff]
        %v319 = vld [vmem:[#allocation2 + $0x18] sm:$0xff]
        %v320 = vld [vmem:[#allocation2 + $0x20] sm:$0xff]
        %v321 = vld [vmem:[#allocation2 + $0x28] sm:$0xff]
        %v322 = vld [vmem:[#allocation2 + $0x30] sm:$0xff]
        %v323 = vld [vmem:[#allocation2 + $0x38] sm:$0xff]
        %v324 = vld [vmem:[#allocation3] sm:$0xff]
        %v325 = vld [vmem:[#allocation3 + $0x8] sm:$0xff]
        %v326 = vld [vmem:[#allocation3 + $0x10] sm:$0xff]
        %v327 = vld [vmem:[#allocation3 + $0x18] sm:$0xff]
        %v328 = vld [vmem:[#allocation3 + $0x20] sm:$0xff]
        %v329 = vld [vmem:[#allocation3 + $0x28] sm:$0xff]
        %v330 = vld [vmem:[#allocation3 + $0x30] sm:$0xff]
        %v331 = vld [vmem:[#allocation3 + $0x38] sm:$0xff]
        %332 = vmax.xlane.f32.xlu0 %v316
        %v333 = vpop.xlane.xlu0 %332
        %334 = vmax.xlane.f32.xlu0 %v317
        %v335 = vpop.xlane.xlu0 %334
        %336 = vmax.xlane.f32.xlu0 %v318
        %v337 = vpop.xlane.xlu0 %336
        %338 = vmax.xlane.f32.xlu0 %v319
        %v339 = vpop.xlane.xlu0 %338
        %340 = vmax.xlane.f32.xlu0 %v320
        %v341 = vpop.xlane.xlu0 %340
        %342 = vmax.xlane.f32.xlu0 %v321
        %v343 = vpop.xlane.xlu0 %342
        %344 = vmax.xlane.f32.xlu0 %v322
        %v345 = vpop.xlane.xlu0 %344
        %346 = vmax.xlane.f32.xlu0 %v323
        %v347 = vpop.xlane.xlu0 %346
        %348 = vadd.xlane.f32.xlu0 %v324
        %v349 = vpop.xlane.xlu0 %348
        %350 = vadd.xlane.f32.xlu0 %v325
        %v351 = vpop.xlane.xlu0 %350
        %352 = vadd.xlane.f32.xlu0 %v326
        %v353 = vpop.xlane.xlu0 %352
        %354 = vadd.xlane.f32.xlu0 %v327
        %v355 = vpop.xlane.xlu0 %354
        %356 = vadd.xlane.f32.xlu0 %v328
        %v357 = vpop.xlane.xlu0 %356
        %358 = vadd.xlane.f32.xlu0 %v329
        %v359 = vpop.xlane.xlu0 %358
        %360 = vadd.xlane.f32.xlu0 %v330
        %v361 = vpop.xlane.xlu0 %360
        %362 = vadd.xlane.f32.xlu0 %v331
        %v363 = vpop.xlane.xlu0 %362
        %v364 = vmul.f32 %v349, 0.00390625
        %v365 = vmul.f32 %v351, 0.00390625
        %v366 = vmul.f32 %v353, 0.00390625
        %v367 = vmul.f32 %v355, 0.00390625
        %v368 = vmul.f32 %v357, 0.00390625
        %v369 = vmul.f32 %v359, 0.00390625
        %v370 = vmul.f32 %v361, 0.00390625
        %v371 = vmul.f32 %v363, 0.00390625
        %v380 = vlaneseq
        %v381 = vand.u32 %v380, 127
        %v382 = vlaneseq
        %v383 = vshrl.u32 %v382, 7
        %v384 = vsub.s32 %v381, %v383
        %v385 = vrot.slane %v333, %v384
        %v386 = vadd.s32 %v381, 4294967288
        %v387 = vlaneseq
        %v388 = vshrl.u32 %v387, 7
        %v389 = vsub.s32 %v386, %v388
        %v390 = vrot.slane %v335, %v389
        %vm391 = vcmask 130112
        %v392 = vsel %vm391, %v390, %v385
        %v393 = vadd.s32 %v381, 4294967280
        %v394 = vlaneseq
        %v395 = vshrl.u32 %v394, 7
        %v396 = vsub.s32 %v393, %v395
        %v397 = vrot.slane %v337, %v396
        %vm398 = vcmask 195712
        %v399 = vsel %vm398, %v397, %v392
        %v400 = vadd.s32 %v381, 4294967272
        %v401 = vlaneseq
        %v402 = vshrl.u32 %v401, 7
        %v403 = vsub.s32 %v400, %v402
        %v404 = vrot.slane %v339, %v403
        %vm405 = vcmask 261312
        %v406 = vsel %vm405, %v404, %v399
        %v407 = vadd.s32 %v381, 4294967264
        %v408 = vlaneseq
        %v409 = vshrl.u32 %v408, 7
        %v410 = vsub.s32 %v407, %v409
        %v411 = vrot.slane %v341, %v410
        %vm412 = vcmask 326912
        %v413 = vsel %vm412, %v411, %v406
        %v414 = vadd.s32 %v381, 4294967256
        %v415 = vlaneseq
        %v416 = vshrl.u32 %v415, 7
        %v417 = vsub.s32 %v414, %v416
        %v418 = vrot.slane %v343, %v417
        %vm419 = vcmask 392512
        %v420 = vsel %vm419, %v418, %v413
        %v421 = vadd.s32 %v381, 4294967248
        %v422 = vlaneseq
        %v423 = vshrl.u32 %v422, 7
        %v424 = vsub.s32 %v421, %v423
        %v425 = vrot.slane %v345, %v424
        %vm426 = vcmask 458112
        %v427 = vsel %vm426, %v425, %v420
        %v428 = vadd.s32 %v381, 4294967240
        %v429 = vlaneseq
        %v430 = vshrl.u32 %v429, 7
        %v431 = vsub.s32 %v428, %v430
        %v432 = vrot.slane %v347, %v431
        %vm433 = vcmask 523712
        %v434 = vsel %vm433, %v432, %v427
        %v444 = vlaneseq
        %v445 = vshrl.u32 %v444, 7
        %v446 = vsub.s32 %v381, %v445
        %v447 = vrot.slane %v364, %v446
        %v448 = vlaneseq
        %v449 = vshrl.u32 %v448, 7
        %v450 = vsub.s32 %v386, %v449
        %v451 = vrot.slane %v365, %v450
        %v452 = vsel %vm391, %v451, %v447
        %v453 = vlaneseq
        %v454 = vshrl.u32 %v453, 7
        %v455 = vsub.s32 %v393, %v454
        %v456 = vrot.slane %v366, %v455
        %v457 = vsel %vm398, %v456, %v452
        %v458 = vlaneseq
        %v459 = vshrl.u32 %v458, 7
        %v460 = vsub.s32 %v400, %v459
        %v461 = vrot.slane %v367, %v460
        %v462 = vsel %vm405, %v461, %v457
        %v463 = vlaneseq
        %v464 = vshrl.u32 %v463, 7
        %v465 = vsub.s32 %v407, %v464
        %v466 = vrot.slane %v368, %v465
        %v467 = vsel %vm412, %v466, %v462
        %v468 = vlaneseq
        %v469 = vshrl.u32 %v468, 7
        %v470 = vsub.s32 %v414, %v469
        %v471 = vrot.slane %v369, %v470
        %v472 = vsel %vm419, %v471, %v467
        %v473 = vlaneseq
        %v474 = vshrl.u32 %v473, 7
        %v475 = vsub.s32 %v421, %v474
        %v476 = vrot.slane %v370, %v475
        %v477 = vsel %vm426, %v476, %v472
        %v478 = vlaneseq
        %v479 = vshrl.u32 %v478, 7
        %v480 = vsub.s32 %v428, %v479
        %v481 = vrot.slane %v371, %v480
        %v482 = vsel %vm433, %v481, %v477
        %vm484 = vcmask 1040384
        %v485 = vsel %vm484, %v434, %v482
        %v486 = vld [vmem:[%s1] sm:$0xff]
        %v487 = vld [vmem:[%s1 + $0x8] sm:$0xff]
        %v488 = vld [vmem:[%s1 + $0x10] sm:$0xff]
        %v489 = vld [vmem:[%s1 + $0x18] sm:$0xff]
        %v490 = vld [vmem:[%s1 + $0x20] sm:$0xff]
        %v491 = vld [vmem:[%s1 + $0x28] sm:$0xff]
        %v492 = vld [vmem:[%s1 + $0x30] sm:$0xff]
        %v493 = vld [vmem:[%s1 + $0x38] sm:$0xff]
        %vm494 = vcmask 523264
        %v496 = vsel %vm494, %v485, 0
        %498 = vmatprep.subr.mxu0 0.0
        %499 = vmatpush1.msra.mxu0 %v486
        %500 = vmatprep.subr.mxu0 0.0
        %501 = vmatpush1.msra.mxu0 %v487
        %502 = vmatprep.subr.mxu0 0.0
        %503 = vmatpush1.msra.mxu0 %v488
        %504 = vmatprep.subr.mxu0 0.0
        %505 = vmatpush1.msra.mxu0 %v489
        %506 = vmatprep.subr.mxu0 0.0
        %507 = vmatpush1.msra.mxu0 %v490
        %508 = vmatprep.subr.mxu0 0.0
        %509 = vmatpush1.msra.mxu0 %v491
        %510 = vmatprep.subr.mxu0 0.0
        %511 = vmatpush1.msra.mxu0 %v492
        %512 = vmatprep.subr.mxu0 0.0
        %513 = vmatpush1.msra.mxu0 %v493
        %514 = vmatprep.subr.mxu0 0.0
        %515 = vmatpush1.msra.mxu0 0.0
        %516 = vmatprep.subr.mxu0 0.0
        %517 = vmatpush1.msra.mxu0 0.0
        %518 = vmatprep.subr.mxu0 0.0
        %519 = vmatpush1.msra.mxu0 0.0
        %520 = vmatprep.subr.mxu0 0.0
        %521 = vmatpush1.msra.mxu0 0.0
        %522 = vmatprep.subr.mxu0 0.0
        %523 = vmatpush1.msra.mxu0 0.0
        %524 = vmatprep.subr.mxu0 0.0
        %525 = vmatpush1.msra.mxu0 0.0
        %526 = vmatprep.subr.mxu0 0.0
        %527 = vmatpush1.msra.mxu0 0.0
        %528 = vmatprep.subr.mxu0 0.0
        %529 = vmatpush1.msra.mxu0 0.0
        %530 = vmatprep.subr.mxu0 0.0
        %531 = vmatpush1.msra.mxu0 0.0
        %532 = vmatprep.subr.mxu0 0.0
        %533 = vmatpush1.msra.mxu0 0.0
        %534 = vmatprep.subr.mxu0 0.0
        %535 = vmatpush1.msra.mxu0 0.0
        %536 = vmatprep.subr.mxu0 0.0
        %537 = vmatpush1.msra.mxu0 0.0
        %538 = vmatprep.subr.mxu0 0.0
        %539 = vmatpush1.msra.mxu0 0.0
        %540 = vmatprep.subr.mxu0 0.0
        %541 = vmatpush1.msra.mxu0 0.0
        %542 = vmatprep.subr.mxu0 0.0
        %543 = vmatpush1.msra.mxu0 0.0
        %544 = vmatprep.subr.mxu0 0.0
        %545 = vmatpush1.msra.mxu0 0.0
        %546 = vmatprep.subr.mxu0 0.0
        %547 = vmatpush1.msra.mxu0 0.0
        %548 = vmatprep.subr.mxu0 0.0
        %549 = vmatpush1.msra.mxu0 0.0
        %550 = vmatprep.subr.mxu0 0.0
        %551 = vmatpush1.msra.mxu0 0.0
        %552 = vmatprep.subr.mxu0 0.0
        %553 = vmatpush1.msra.mxu0 0.0
        %554 = vmatprep.subr.mxu0 0.0
        %555 = vmatpush1.msra.mxu0 0.0
        %556 = vmatprep.subr.mxu0 0.0
        %557 = vmatpush1.msra.mxu0 0.0
        %558 = vmatprep.subr.mxu0 0.0
        %559 = vmatpush1.msra.mxu0 0.0
        %560 = vmatprep.subr.mxu0 0.0
        %561 = vmatpush1.msra.mxu0 0.0
        %562 = vmatprep.mubr.f32.mxu0 0.0
        %563 = vmatmul.mubr.f32.gmra.mrb[0].mxu0 %v496
        %v564 = vpop.f32.mrb[0].mxu0
        %v565 = vadd.f32 0.0, %v564
        %v566 = vpop.f32.mrb[0].mxu0
        %567 = vdwg.mxu0
        %v568 = vmax.f32 %v565, 0.0
        %v569 = vld [vmem:[%s2] sm:$0xf]
        %vm570 = vcmask 31744
        %v572 = vsel %vm570, %v568, 0
        %vm574 = vcmask 1043456
        %v576 = vsel %vm574, %v569, 0
        %578 = vmatprep.subr.mxu0 0.0
        %579 = vmatpush1.msra.mxu0 %v576
        %580 = vmatprep.subr.mxu0 0.0
        %581 = vmatpush1.msra.mxu0 0.0
        %582 = vmatprep.subr.mxu0 0.0
        %583 = vmatpush1.msra.mxu0 0.0
        %584 = vmatprep.subr.mxu0 0.0
        %585 = vmatpush1.msra.mxu0 0.0
        %586 = vmatprep.subr.mxu0 0.0
        %587 = vmatpush1.msra.mxu0 0.0
        %588 = vmatprep.subr.mxu0 0.0
        %589 = vmatpush1.msra.mxu0 0.0
        %590 = vmatprep.subr.mxu0 0.0
        %591 = vmatpush1.msra.mxu0 0.0
        %592 = vmatprep.subr.mxu0 0.0
        %593 = vmatpush1.msra.mxu0 0.0
        %594 = vmatprep.subr.mxu0 0.0
        %595 = vmatpush1.msra.mxu0 0.0
        %596 = vmatprep.subr.mxu0 0.0
        %597 = vmatpush1.msra.mxu0 0.0
        %598 = vmatprep.subr.mxu0 0.0
        %599 = vmatpush1.msra.mxu0 0.0
        %600 = vmatprep.subr.mxu0 0.0
        %601 = vmatpush1.msra.mxu0 0.0
        %602 = vmatprep.subr.mxu0 0.0
        %603 = vmatpush1.msra.mxu0 0.0
        %604 = vmatprep.subr.mxu0 0.0
        %605 = vmatpush1.msra.mxu0 0.0
        %606 = vmatprep.subr.mxu0 0.0
        %607 = vmatpush1.msra.mxu0 0.0
        %608 = vmatprep.subr.mxu0 0.0
        %609 = vmatpush1.msra.mxu0 0.0
        %610 = vmatprep.subr.mxu0 0.0
        %611 = vmatpush1.msra.mxu0 0.0
        %612 = vmatprep.subr.mxu0 0.0
        %613 = vmatpush1.msra.mxu0 0.0
        %614 = vmatprep.subr.mxu0 0.0
        %615 = vmatpush1.msra.mxu0 0.0
        %616 = vmatprep.subr.mxu0 0.0
        %617 = vmatpush1.msra.mxu0 0.0
        %618 = vmatprep.subr.mxu0 0.0
        %619 = vmatpush1.msra.mxu0 0.0
        %620 = vmatprep.subr.mxu0 0.0
        %621 = vmatpush1.msra.mxu0 0.0
        %622 = vmatprep.subr.mxu0 0.0
        %623 = vmatpush1.msra.mxu0 0.0
        %624 = vmatprep.subr.mxu0 0.0
        %625 = vmatpush1.msra.mxu0 0.0
        %626 = vmatprep.subr.mxu0 0.0
        %627 = vmatpush1.msra.mxu0 0.0
        %628 = vmatprep.subr.mxu0 0.0
        %629 = vmatpush1.msra.mxu0 0.0
        %630 = vmatprep.subr.mxu0 0.0
        %631 = vmatpush1.msra.mxu0 0.0
        %632 = vmatprep.subr.mxu0 0.0
        %633 = vmatpush1.msra.mxu0 0.0
        %634 = vmatprep.subr.mxu0 0.0
        %635 = vmatpush1.msra.mxu0 0.0
        %636 = vmatprep.subr.mxu0 0.0
        %637 = vmatpush1.msra.mxu0 0.0
        %638 = vmatprep.subr.mxu0 0.0
        %639 = vmatpush1.msra.mxu0 0.0
        %640 = vmatprep.subr.mxu0 0.0
        %641 = vmatpush1.msra.mxu0 0.0
        %642 = vmatprep.mubr.f32.mxu0 0.0
        %643 = vmatmul.mubr.f32.gmra.mrb[0].mxu0 %v572
        %v644 = vpop.f32.mrb[0].mxu0
        %v645 = vadd.f32 0.0, %v644
        %v646 = vpop.f32.mrb[0].mxu0
        %647 = vdwg.mxu0
        %v649 = vrot.slane %v645, 1
        %v651 = vadd.f32 %v645, %v649
        %v652 = vxor.u32 %v651, 2147483648
        %v653 = vmul.f32 %v652, 1.442695
        %v654 = vpow.pop %v653
        %v655 = vadd.f32 %v654, 1.0
        %v656 = vrcp.pop %v655
        %v657 = vmul.f32 1.0, %v656
        %vm658 = vcmask 516096
        %659 = vst.msk [vmem:[%s187] sm:$0x1] %vm658, %v657
        %s660 = sand.u32 %s96, 1
        %s661 = scalar_lea.sflag [#allocation6], %s660
        %s662 = sand.u32 %s96, 1
        %s663 = scalar_lea.vmem [#allocation7], %s662
        // Predicated region
        $region37: #{tpu_custom_call.1} parent=31 // pred_check
          %p664 = pneg %p106
        $region38: #{tpu_custom_call.1} parent=31 // pred_check_branch
          %666 = sbr.rel (%p664) target = $region40
        $region39: #{tpu_custom_call.1} parent=31 // pred_region
          %s668 = ssub.s32 16, 16
          %669 = vsyncadd %s661, %s668
          %s670 = smul.addr %s20, 16
          %s671 = scalar_lea.hbm %s3, %s670
          %s673 = sshll.u32 %s663, 4
          %s674 = int_to_ptr.vmem [resolvable:$true] %s673
          %676 = dma.vmem_to_hbm [thread:$0]  %s674, 16, %s671, %s661
        $region40: #{tpu_custom_call.1} parent=31 // pred_fallthru
          _
      $region32: #{tpu_custom_call.1} parent=5 // pred_fallthru
        _
      %p677 = scmp.le.s32.totalorder 2, %s15
      // Predicated region
      $region41: #{tpu_custom_call.1} parent=5 // pred_check
        %p678 = pneg %p677
      $region42: #{tpu_custom_call.1} parent=5 // pred_check_branch
        %680 = sbr.rel (%p678) target = $region44
      $region43: #{tpu_custom_call.1} parent=5 // pred_region
        %s681 = ssub.s32 %s15, 2
        // Predicated region
        $region45: #{tpu_custom_call.1} parent=43 // pred_check
          %p682 = pneg %p112
        $region46: #{tpu_custom_call.1} parent=43 // pred_check_branch
          %684 = sbr.rel (%p682) target = $region48
        $region47: #{tpu_custom_call.1} parent=43 // pred_region
          %s685 = sand.u32 %s97, 1
          %s686 = scalar_lea.sflag [#allocation6], %s685
          %s687 = sand.u32 %s97, 1
          %s688 = scalar_lea.vmem [#allocation7], %s687
          %689 = dma.done %s686, 16
        $region48: #{tpu_custom_call.1} parent=43 // pred_fallthru
          _
      $region44: #{tpu_custom_call.1} parent=5 // pred_fallthru
        _
    $region6: #{tpu_custom_call.1} parent=1 // loop_footer
      %s19 = sadd.s32 1, %s15
    $region7: #{tpu_custom_call.1} parent=1 // loop_footer_branch
      %14 = sbr.rel target = $region3
    $region8: #{tpu_custom_call.1} parent=1 // loop_exit
      _
    %690 = vsyncpa [#allocation5], 1
    %s691 = scalar_lea.sflag [#allocation5], 1
    %692 = vsyncpa %s691, 1
    %693 = vsyncpa [#allocation6], 1
    %s694 = scalar_lea.sflag [#allocation6], 1
    %695 = vsyncpa %s694, 1

</llo_original>
